<compile_context>
chip_gen: v6e
topology: v6e:2x2x1
jax: 0.10.0
libtpu: 0.0.40
codegen_flags: <defaults>
</compile_context>

<pallas_src>
import functools

import jax
import jax.numpy as jnp
from jax.experimental import pallas as pl
from jax.experimental.pallas import tpu as pltpu


# ---------------------------------------------------------------------------
# Pallas kernel
# ---------------------------------------------------------------------------
def _detect_kernel(anch_ref, bbox_ref, conf_ref, cls_ref,
                   pbox_ref, score_ref, idx_ref,
                   *, stride, nW):
    # anch_ref : SMEM (2*nA,) f32   -> [w0, h0, w1, h1, ...] (scalar prefetch)
    # bbox_ref : (tb, 1, 1, 4*T)    interleaved bbox logits [x,y,w,h per cell]
    # conf_ref : (tb, 1, 1, T)      objectness logits (lane-dense)
    # cls_ref  : (tb, 1, T, n_cls)  class logits (native channels-last)
    # outputs  : pbox (tb,1,1,4*T) f32, score (tb,1,1,T) f32, idx (tb,1,1,T) i32
    a = pl.program_id(1)          # anchor plane
    j = pl.program_id(2)          # HW tile index

    aw = anch_ref[2 * a]          # per-anchor w/h scalars from SMEM
    ah = anch_ref[2 * a + 1]

    t4 = bbox_ref.shape[-1]
    tile_hw = t4 // 4
    n_cls = cls_ref.shape[-1]

    # --- per-lane component id and global flat cell index -------------------
    lane = jax.lax.broadcasted_iota(jnp.int32, (1, 1, 1, t4), 3)
    comp = jnp.bitwise_and(lane, 3)                    # 0:x 1:y 2:w 3:h
    cell = jnp.right_shift(lane, 2) + j * tile_hw      # global flat cell index
    cf = cell.astype(jnp.float32)
    # exact floor(cell / nW): (cell + 0.5)/nW is never an integer and the f32
    # rounding error stays below 0.5/nW for cell < 2^22 (asserted in wrapper).
    gy = jnp.floor((cf + 0.5) * (1.0 / nW))
    gx = cf - gy * float(nW)                           # cell % nW, exact

    # --- bbox decode: interleaved lanes, one unmasked full-block store ------
    s = jax.nn.sigmoid(bbox_ref[...].astype(jnp.float32))      # (tb,1,1,4T)
    off = jnp.where(comp == 0, gx, jnp.where(comp == 1, gy, 0.0))
    anch = jnp.where(comp == 2, aw, ah)
    xy = (s * 2.0 - 0.5 + off) * stride
    wh = (s * 2.0) ** 2 * anch
    pbox_ref[...] = jnp.where(comp < 2, xy, wh)

    # --- class max / argmax on raw logits (sigmoid is monotonic) ------------
    # One dense (T, n_cls) -> (n_cls, T) transpose, then sublane reductions:
    # cls_max / idx come out lane-major, no degenerate (T,1)->(1,T) relayouts.
    # (f32 compute kept for v5e lowering safety; inputs stay bf16 in HBM/DMA.)
    logits = cls_ref[...].astype(jnp.float32)                   # (tb,1,T,C)
    lt = jnp.swapaxes(logits, 2, 3)                             # (tb,1,C,T)
    cls_max = jnp.max(lt, axis=2, keepdims=True)                # (tb,1,1,T)
    cidx = jax.lax.broadcasted_iota(jnp.int32, lt.shape, 2).astype(jnp.float32)
    # first index attaining the max (float indices are exact for small n_cls)
    idx_f = jnp.min(jnp.where(lt >= cls_max, cidx, float(n_cls)),
                    axis=2, keepdims=True)                      # (tb,1,1,T)

    p_conf = jax.nn.sigmoid(conf_ref[...].astype(jnp.float32))  # (tb,1,1,T)
    score_ref[...] = p_conf * jax.nn.sigmoid(cls_max)
    idx_ref[...] = idx_f.astype(jnp.int32)


# ---------------------------------------------------------------------------
# Blocking heuristic: big, VMEM-budgeted blocks; fold the batch when it keeps
# enough parallel steps for v7x's two TensorCores; split oversized single-tile
# levels so the grid never collapses to a couple of odd steps.
# ---------------------------------------------------------------------------
def _choose_blocking(nB, nA, HW, n_cls, itemsize,
                     vmem_target_bytes=16 << 20, min_steps=8):
    # Rough per-cell VMEM cost: double-buffered inputs/outputs + live temps
    # (f32 class logits + transpose, f32 iota/mask, f32 bbox temporaries).
    in_b = (n_cls + 5) * itemsize          # cls + bbox(4) + conf(1)
    out_b = 6 * 4                          # pbox(4) + score + idx
    tmp_b = n_cls * 12 + 80
    per_cell = 2 * (in_b + out_b) + tmp_b
    budget_cells = max(256, vmem_target_bytes // per_cell)

    def fit_hw(cells):
        if HW <= cells:
            return HW
        return max(128, (cells // 128) * 128)

    # Prefer folding the whole batch into each block (fewer, fatter steps),
    # unless that starves the dual-TensorCore grid of parallel steps.
    tile_b = nB
    tile_hw = fit_hw(max(budget_cells // max(nB, 1), 1))
    if nB > 1 and (budget_cells // nB < 128
                   or nA * pl.cdiv(HW, tile_hw) < min_steps):
        tile_b = 1
        tile_hw = fit_hw(budget_cells)

    # If the level still collapses to <min_steps fat steps, split HW further
    # (only when tiles are big enough that step overhead stays negligible).
    n_b = pl.cdiv(nB, tile_b)
    n_hw = pl.cdiv(HW, tile_hw)
    if n_b * nA * n_hw < min_steps and tile_hw >= 1024:
        want = max(1, -(-min_steps // (n_b * nA)))
        t = -(-HW // want)
        t = ((t + 127) // 128) * 128
        if 128 <= t < tile_hw:
            tile_hw = t
    return tile_b, tile_hw


# ---------------------------------------------------------------------------
# Python wrapper (DetectLayer forward, inference path)
# ---------------------------------------------------------------------------
def detect_layer_forward(raw, img_size=None, labels=None, level_i=0,
                         tile_hw=None, tile_b=None):
    # --- deterministic "config" (same role as cfg in __init__) -------------
    anchors_all = [[10., 13.], [16., 30.], [33., 23.],
                   [30., 61.], [62., 45.], [59., 119.],
                   [116., 90.], [156., 198.], [373., 326.]]
    anchor_indices = [[0, 1, 2], [3, 4, 5], [6, 7, 8]]
    out_strides = [8, 16, 32]

    idxs = anchor_indices[level_i]
    anchors = jnp.asarray([anchors_all[i] for i in idxs], dtype=jnp.float32)
    stride = float(out_strides[level_i])

    t_bbox = raw['bbox']                              # (nB, nA, nH, nW, 4)
    conf_logits = raw['conf']                         # (nB, nA, nH, nW, 1)
    cls_logits = raw['class']                         # (nB, nA, nH, nW, n_cls)

    nB, nA, nH, nW, bb_param = t_bbox.shape
    assert bb_param == 4 and nA == anchors.shape[0]
    assert conf_logits.shape == (nB, nA, nH, nW, 1)
    n_cls = cls_logits.shape[-1]
    HW = nH * nW
    N = nA * HW
    assert HW <= (1 << 22), "f32 floor-div grid trick needs HW < 2^22"

    itemsize = jnp.dtype(cls_logits.dtype).itemsize
    auto_b, auto_hw = _choose_blocking(nB, nA, HW, n_cls, itemsize)
    if tile_b is None:
        tile_b = auto_b
    if tile_hw is None:
        tile_hw = auto_hw
    tile_b = max(1, min(tile_b, nB))
    tile_hw = min(tile_hw, HW)
    assert tile_hw == HW or tile_hw % 128 == 0, \
        "tile_hw must be a multiple of 128 or the full plane"
    n_b_blk = pl.cdiv(nB, tile_b)
    n_hw_tiles = pl.cdiv(HW, tile_hw)

    # --- free (contiguous) reshapes only; no HBM transposes -----------------
    bbox4 = t_bbox.reshape(nB, nA, 1, 4 * HW)         # interleaved x,y,w,h
    conf_r = conf_logits.reshape(nB, nA, 1, HW)
    cls_r = cls_logits.reshape(nB, nA, HW, n_cls)
    anchors_flat = anchors.reshape(-1)                # (2*nA,) f32 -> SMEM

    kernel = functools.partial(_detect_kernel, stride=stride, nW=nW)

    wide_spec = pl.BlockSpec((tile_b, 1, 1, 4 * tile_hw),
                             lambda b, a, j, anch: (b, a, 0, j))
    slim_spec = pl.BlockSpec((tile_b, 1, 1, tile_hw),
                             lambda b, a, j, anch: (b, a, 0, j))
    cls_spec = pl.BlockSpec((tile_b, 1, tile_hw, n_cls),
                            lambda b, a, j, anch: (b, a, j, 0))

    pbox4, score_r, idx_r = pl.pallas_call(
        kernel,
        out_shape=(
            jax.ShapeDtypeStruct((nB, nA, 1, 4 * HW), jnp.float32),
            jax.ShapeDtypeStruct((nB, nA, 1, HW), jnp.float32),
            jax.ShapeDtypeStruct((nB, nA, 1, HW), jnp.int32),
        ),
        grid_spec=pltpu.PrefetchScalarGridSpec(
            num_scalar_prefetch=1,                    # anchors -> SMEM
            grid=(n_b_blk, nA, n_hw_tiles),
            in_specs=[wide_spec, slim_spec, cls_spec],
            out_specs=(wide_spec, slim_spec, slim_spec),
        ),
        compiler_params=pltpu.CompilerParams(
            dimension_semantics=("parallel", "parallel", "parallel"),
            vmem_limit_bytes=40 * 1024 * 1024),
    )(anchors_flat, bbox4, conf_r, cls_r)

    preds = {
        'bbox': pbox4.reshape(nB, N, 4),              # free reshape, f32
        'class_idx': idx_r.reshape(nB, N),            # int32
        'score': score_r.reshape(nB, N),              # f32
    }
    if labels is None:
        return preds, None
    # TODO(synk): training loss path (anchor assignment / IoU / BCE) not implemented.
    raise NotImplementedError("training loss path not implemented in Pallas")


# ---------------------------------------------------------------------------
# Pure-JAX reference of the same decode (for validation)
# ---------------------------------------------------------------------------
def _reference_forward(raw, level_i=0):
    anchors_all = jnp.array(
        [[10., 13.], [16., 30.], [33., 23.],
         [30., 61.], [62., 45.], [59., 119.],
         [116., 90.], [156., 198.], [373., 326.]], dtype=jnp.float32)
    anchor_indices = [[0, 1, 2], [3, 4, 5], [6, 7, 8]]
    out_strides = [8, 16, 32]
    anchors = anchors_all[jnp.array(anchor_indices[level_i])]
    stride = float(out_strides[level_i])

    t_bbox = raw['bbox'].astype(jnp.float32)
    conf_logits = raw['conf'].astype(jnp.float32)
    cls_logits = raw['class'].astype(jnp.float32)
    nB, nA, nH, nW, _ = t_bbox.shape
    yv, xv = jnp.meshgrid(jnp.arange(nH), jnp.arange(nW), indexing='ij')
    grid = jnp.stack([xv, yv], axis=2).reshape(1, 1, nH, nW, 2).astype(jnp.float32)

    p = jax.nn.sigmoid(t_bbox)
    xy = (p[..., 0:2] * 2 - 0.5 + grid) * stride
    wh = (p[..., 2:4] * 2) ** 2 * anchors.reshape(1, nA, 1, 1, 2)
    p_bbox = jnp.concatenate([xy, wh], axis=-1).reshape(nB, nA * nH * nW, 4)

    p_conf = jax.nn.sigmoid(conf_logits)
    p_cls = jax.nn.sigmoid(cls_logits)
    cls_score = jnp.max(p_cls, axis=-1, keepdims=True)
    cls_idx = jnp.argmax(p_cls, axis=-1)
    confs = p_conf * cls_score
    return {
        'bbox': p_bbox,
        'class_idx': cls_idx.reshape(nB, -1).astype(jnp.int32),
        'score': confs.reshape(nB, -1),
    }


def _check(preds, ref, atol_bb=1e-3, rtol_bb=1e-4):
    assert jnp.allclose(preds['bbox'], ref['bbox'], atol=atol_bb, rtol=rtol_bb)
    assert jnp.allclose(preds['score'], ref['score'], atol=1e-5, rtol=1e-5)
    assert jnp.all(preds['class_idx'] == ref['class_idx'])


if __name__ == "__main__":
    key = jax.random.PRNGKey(0)
    k1, k2, k3, k4, k5, k6, k7, k8, k9 = jax.random.split(key, 9)

    # ---- Config A: f32, level 0, multi-HW-tile path (tile_hw=128, 2 tiles) -
    nB, nA, nH, nW, n_cls = 2, 3, 16, 16, 8
    raw_a = {
        'bbox': jax.random.normal(k1, (nB, nA, nH, nW, 4), jnp.float32),
        'conf': jax.random.normal(k2, (nB, nA, nH, nW, 1), jnp.float32),
        'class': jax.random.normal(k3, (nB, nA, nH, nW, n_cls), jnp.float32),
    }
    preds_a, loss_a = detect_layer_forward(raw_a, img_size=(nH * 8, nW * 8),
                                           labels=None, level_i=0, tile_hw=128)
    jax.block_until_ready(preds_a['bbox'])
    assert loss_a is None
    _check(preds_a, _reference_forward(raw_a, level_i=0))

    # ---- Config B: bf16 activations, level 1, whole-batch block (tile_b=2) -
    nB2, nH2, nW2, n_cls2 = 2, 8, 8, 16
    raw_b = {
        'bbox': jax.random.normal(k4, (nB2, nA, nH2, nW2, 4)).astype(jnp.bfloat16),
        'conf': jax.random.normal(k5, (nB2, nA, nH2, nW2, 1)).astype(jnp.bfloat16),
        'class': jax.random.normal(k6, (nB2, nA, nH2, nW2, n_cls2)).astype(jnp.bfloat16),
    }
    preds_b, loss_b = detect_layer_forward(raw_b, img_size=(nH2 * 16, nW2 * 16),
                                           labels=None, level_i=1, tile_b=2)
    jax.block_until_ready(preds_b['bbox'])
    assert loss_b is None
    _check(preds_b, _reference_forward(raw_b, level_i=1),
           atol_bb=1e-3, rtol_bb=1e-3)

    # ---- Config C: f32, n_cls=80, HW=400 not divisible by tile (masked tail)
    nB3, nH3, nW3, n_cls3 = 1, 20, 20, 80
    raw_c = {
        'bbox': jax.random.normal(k7, (nB3, nA, nH3, nW3, 4), jnp.float32),
        'conf': jax.random.normal(k8, (nB3, nA, nH3, nW3, 1), jnp.float32),
        'class': jax.random.normal(k9, (nB3, nA, nH3, nW3, n_cls3), jnp.float32),
    }
    preds_c, loss_c = detect_layer_forward(raw_c, img_size=(nH3 * 32, nW3 * 32),
                                           labels=None, level_i=2, tile_hw=256)
    jax.block_until_ready(preds_c['bbox'])
    assert loss_c is None
    _check(preds_c, _reference_forward(raw_c, level_i=2),
           atol_bb=1e-3, rtol_bb=1e-3)

    print("KERNEL_OK")
</pallas_src>

<mosaic_0001>
module attributes {stable_mosaic.version = 11 : i64} {
  func.func @_detect_kernel(%arg0: i32, %arg1: i32, %arg2: i32, %arg3: memref<6xf32, #tpu.memory_space<smem>>, %arg4: memref<1x1x1x512xf32, #tpu.memory_space<vmem>>, %arg5: memref<1x1x1x128xf32, #tpu.memory_space<vmem>>, %arg6: memref<1x1x128x8xf32, #tpu.memory_space<vmem>>, %arg7: memref<1x1x1x512xf32, #tpu.memory_space<vmem>>, %arg8: memref<1x1x1x128xf32, #tpu.memory_space<vmem>>, %arg9: memref<1x1x1x128xi32, #tpu.memory_space<vmem>>) attributes {dimension_semantics = [#tpu.dimension_semantics<parallel>, #tpu.dimension_semantics<parallel>, #tpu.dimension_semantics<parallel>], iteration_bounds = array<i64: 2, 3, 2>, scalar_prefetch = 1 : i64, scratch_operands = 0 : i64, tpu.core_type = #tpu.core_type<tc>, window_params = [{transform_indices = @transform_0, window_bounds = array<i64: 1, 1, 1, 512>}, {transform_indices = @transform_1, window_bounds = array<i64: 1, 1, 1, 128>}, {transform_indices = @transform_2, window_bounds = array<i64: 1, 1, 128, 8>}, {transform_indices = @transform_3, window_bounds = array<i64: 1, 1, 1, 512>}, {transform_indices = @transform_4, window_bounds = array<i64: 1, 1, 1, 128>}, {transform_indices = @transform_5, window_bounds = array<i64: 1, 1, 1, 128>}]} {
    %c2_i32 = arith.constant 2 : i32
    %0 = arith.muli %c2_i32, %arg1 : i32
    %1 = arith.index_cast %0 : i32 to index
    %2 = memref.load %arg3[%1] : memref<6xf32, #tpu.memory_space<smem>>
    %c2_i32_0 = arith.constant 2 : i32
    %3 = arith.muli %c2_i32_0, %arg1 : i32
    %c1_i32 = arith.constant 1 : i32
    %4 = arith.addi %3, %c1_i32 : i32
    %5 = arith.index_cast %4 : i32 to index
    %6 = memref.load %arg3[%5] : memref<6xf32, #tpu.memory_space<smem>>
    %7 = tpu.iota {dimensions = array<i32: 3>} : vector<1x1x1x512xi32>
    %c3_i32 = arith.constant 3 : i32
    %8 = vector.broadcast %c3_i32 : i32 to vector<1x1x1x512xi32>
    %9 = arith.andi %7, %8 : vector<1x1x1x512xi32>
    %c2_i32_1 = arith.constant 2 : i32
    %10 = vector.broadcast %c2_i32_1 : i32 to vector<1x1x1x512xi32>
    %11 = arith.shrsi %7, %10 : vector<1x1x1x512xi32>
    %c128_i32 = arith.constant 128 : i32
    %12 = arith.muli %arg2, %c128_i32 : i32
    %13 = vector.broadcast %12 : i32 to vector<1x1x1x512xi32>
    %14 = arith.addi %11, %13 : vector<1x1x1x512xi32>
    %15 = arith.sitofp %14 : vector<1x1x1x512xi32> to vector<1x1x1x512xf32>
    %cst = arith.constant 5.000000e-01 : f32
    %16 = vector.broadcast %cst : f32 to vector<1x1x1x512xf32>
    %17 = arith.addf %15, %16 : vector<1x1x1x512xf32>
    %cst_2 = arith.constant 6.250000e-02 : f32
    %18 = vector.broadcast %cst_2 : f32 to vector<1x1x1x512xf32>
    %19 = arith.mulf %17, %18 : vector<1x1x1x512xf32>
    %20 = math.floor %19 : vector<1x1x1x512xf32>
    %cst_3 = arith.constant 1.600000e+01 : f32
    %21 = vector.broadcast %cst_3 : f32 to vector<1x1x1x512xf32>
    %22 = arith.mulf %20, %21 : vector<1x1x1x512xf32>
    %23 = arith.subf %15, %22 : vector<1x1x1x512xf32>
    %c0 = arith.constant 0 : index
    %c0_4 = arith.constant 0 : index
    %c0_5 = arith.constant 0 : index
    %c0_6 = arith.constant 0 : index
    %24 = vector.load %arg4[%c0, %c0_4, %c0_5, %c0_6] : memref<1x1x1x512xf32, #tpu.memory_space<vmem>>, vector<1x1x1x512xf32>
    %25 = arith.negf %24 : vector<1x1x1x512xf32>
    %26 = math.exp %25 : vector<1x1x1x512xf32>
    %cst_7 = arith.constant 1.000000e+00 : f32
    %27 = vector.broadcast %cst_7 : f32 to vector<1x1x1x512xf32>
    %28 = arith.addf %27, %26 : vector<1x1x1x512xf32>
    %29 = arith.divf %27, %28 : vector<1x1x1x512xf32>
    %c0_i32 = arith.constant 0 : i32
    %30 = vector.broadcast %c0_i32 : i32 to vector<1x1x1x512xi32>
    %31 = arith.cmpi eq, %9, %30 : vector<1x1x1x512xi32>
    %c1_i32_8 = arith.constant 1 : i32
    %32 = vector.broadcast %c1_i32_8 : i32 to vector<1x1x1x512xi32>
    %33 = arith.cmpi eq, %9, %32 : vector<1x1x1x512xi32>
    %cst_9 = arith.constant 0.000000e+00 : f32
    %34 = vector.broadcast %cst_9 : f32 to vector<1x1x1x512xf32>
    %35 = arith.select %33, %20, %34 : vector<1x1x1x512xi1>, vector<1x1x1x512xf32>
    %36 = arith.select %31, %23, %35 : vector<1x1x1x512xi1>, vector<1x1x1x512xf32>
    %c2_i32_10 = arith.constant 2 : i32
    %37 = vector.broadcast %c2_i32_10 : i32 to vector<1x1x1x512xi32>
    %38 = arith.cmpi eq, %9, %37 : vector<1x1x1x512xi32>
    %39 = vector.broadcast %2 : f32 to vector<1x1x1x512xf32>
    %40 = vector.broadcast %6 : f32 to vector<1x1x1x512xf32>
    %41 = arith.select %38, %39, %40 : vector<1x1x1x512xi1>, vector<1x1x1x512xf32>
    %cst_11 = arith.constant 2.000000e+00 : f32
    %42 = vector.broadcast %cst_11 : f32 to vector<1x1x1x512xf32>
    %43 = arith.mulf %29, %42 : vector<1x1x1x512xf32>
    %cst_12 = arith.constant 5.000000e-01 : f32
    %44 = vector.broadcast %cst_12 : f32 to vector<1x1x1x512xf32>
    %45 = arith.subf %43, %44 : vector<1x1x1x512xf32>
    %46 = arith.addf %45, %36 : vector<1x1x1x512xf32>
    %cst_13 = arith.constant 8.000000e+00 : f32
    %47 = vector.broadcast %cst_13 : f32 to vector<1x1x1x512xf32>
    %48 = arith.mulf %46, %47 : vector<1x1x1x512xf32>
    %cst_14 = arith.constant 2.000000e+00 : f32
    %49 = vector.broadcast %cst_14 : f32 to vector<1x1x1x512xf32>
    %50 = arith.mulf %29, %49 : vector<1x1x1x512xf32>
    %51 = arith.mulf %50, %50 : vector<1x1x1x512xf32>
    %52 = arith.mulf %51, %41 : vector<1x1x1x512xf32>
    %c2_i32_15 = arith.constant 2 : i32
    %53 = vector.broadcast %c2_i32_15 : i32 to vector<1x1x1x512xi32>
    %54 = arith.cmpi slt, %9, %53 : vector<1x1x1x512xi32>
    %55 = arith.select %54, %48, %52 : vector<1x1x1x512xi1>, vector<1x1x1x512xf32>
    %c0_16 = arith.constant 0 : index
    %c0_17 = arith.constant 0 : index
    %c0_18 = arith.constant 0 : index
    %c0_19 = arith.constant 0 : index
    %56 = vector.load %arg7[%c0_16, %c0_17, %c0_18, %c0_19] : memref<1x1x1x512xf32, #tpu.memory_space<vmem>>, vector<1x1x1x512xf32>
    tpu.vector_store %arg7[%c0_16, %c0_17, %c0_18, %c0_19], %55 {strides = array<i32>} : memref<1x1x1x512xf32, #tpu.memory_space<vmem>>, vector<1x1x1x512xf32>,
    %c0_20 = arith.constant 0 : index
    %c0_21 = arith.constant 0 : index
    %c0_22 = arith.constant 0 : index
    %c0_23 = arith.constant 0 : index
    %57 = vector.load %arg6[%c0_20, %c0_21, %c0_22, %c0_23] : memref<1x1x128x8xf32, #tpu.memory_space<vmem>>, vector<1x1x128x8xf32>
    %58 = tpu.transpose %57, [0, 1, 3, 2] : vector<1x1x128x8xf32> -> vector<1x1x8x128xf32>
    %cst_24 = arith.constant dense<0xFF800000> : vector<1x1x128xf32>
    %59 = vector.multi_reduction <maximumf>, %58, %cst_24 [2] : vector<1x1x8x128xf32> to vector<1x1x128xf32>
    %60 = vector.shape_cast %59 : vector<1x1x128xf32> to vector<1x1x1x128xf32>
    %61 = tpu.iota {dimensions = array<i32: 2>} : vector<1x1x8x128xi32>
    %62 = arith.sitofp %61 : vector<1x1x8x128xi32> to vector<1x1x8x128xf32>
    %63 = vector.broadcast %60 : vector<1x1x1x128xf32> to vector<1x1x8x128xf32>
    %64 = arith.cmpf oge, %58, %63 : vector<1x1x8x128xf32>
    %cst_25 = arith.constant 8.000000e+00 : f32
    %65 = vector.broadcast %cst_25 : f32 to vector<1x1x8x128xf32>
    %66 = arith.select %64, %62, %65 : vector<1x1x8x128xi1>, vector<1x1x8x128xf32>
    %cst_26 = arith.constant dense<0x7F800000> : vector<1x1x128xf32>
    %67 = vector.multi_reduction <minimumf>, %66, %cst_26 [2] : vector<1x1x8x128xf32> to vector<1x1x128xf32>
    %68 = vector.shape_cast %67 : vector<1x1x128xf32> to vector<1x1x1x128xf32>
    %c0_27 = arith.constant 0 : index
    %c0_28 = arith.constant 0 : index
    %c0_29 = arith.constant 0 : index
    %c0_30 = arith.constant 0 : index
    %69 = vector.load %arg5[%c0_27, %c0_28, %c0_29, %c0_30] : memref<1x1x1x128xf32, #tpu.memory_space<vmem>>, vector<1x1x1x128xf32>
    %70 = arith.negf %69 : vector<1x1x1x128xf32>
    %71 = math.exp %70 : vector<1x1x1x128xf32>
    %cst_31 = arith.constant 1.000000e+00 : f32
    %72 = vector.broadcast %cst_31 : f32 to vector<1x1x1x128xf32>
    %73 = arith.addf %72, %71 : vector<1x1x1x128xf32>
    %74 = arith.divf %72, %73 : vector<1x1x1x128xf32>
    %75 = arith.negf %60 : vector<1x1x1x128xf32>
    %76 = math.exp %75 : vector<1x1x1x128xf32>
    %cst_32 = arith.constant 1.000000e+00 : f32
    %77 = vector.broadcast %cst_32 : f32 to vector<1x1x1x128xf32>
    %78 = arith.addf %77, %76 : vector<1x1x1x128xf32>
    %79 = arith.divf %77, %78 : vector<1x1x1x128xf32>
    %80 = arith.mulf %74, %79 : vector<1x1x1x128xf32>
    %c0_33 = arith.constant 0 : index
    %c0_34 = arith.constant 0 : index
    %c0_35 = arith.constant 0 : index
    %c0_36 = arith.constant 0 : index
    %81 = vector.load %arg8[%c0_33, %c0_34, %c0_35, %c0_36] : memref<1x1x1x128xf32, #tpu.memory_space<vmem>>, vector<1x1x1x128xf32>
    tpu.vector_store %arg8[%c0_33, %c0_34, %c0_35, %c0_36], %80 {strides = array<i32>} : memref<1x1x1x128xf32, #tpu.memory_space<vmem>>, vector<1x1x1x128xf32>,
    %82 = arith.fptosi %68 : vector<1x1x1x128xf32> to vector<1x1x1x128xi32>
    %c0_37 = arith.constant 0 : index
    %c0_38 = arith.constant 0 : index
    %c0_39 = arith.constant 0 : index
    %c0_40 = arith.constant 0 : index
    %83 = vector.load %arg9[%c0_37, %c0_38, %c0_39, %c0_40] : memref<1x1x1x128xi32, #tpu.memory_space<vmem>>, vector<1x1x1x128xi32>
    tpu.vector_store %arg9[%c0_37, %c0_38, %c0_39, %c0_40], %82 {strides = array<i32>} : memref<1x1x1x128xi32, #tpu.memory_space<vmem>>, vector<1x1x1x128xi32>,
    return
  }
  func.func @transform_0(%arg0: i32, %arg1: i32, %arg2: i32, %arg3: memref<6xf32, #tpu.memory_space<smem>>) -> (i32, i32, i32, i32) {
    %c0_i32 = arith.constant 0 : i32
    %c0_i32_0 = arith.constant 0 : i32
    return %arg0, %arg1, %c0_i32, %arg2 : i32, i32, i32, i32
  }
  func.func @transform_1(%arg0: i32, %arg1: i32, %arg2: i32, %arg3: memref<6xf32, #tpu.memory_space<smem>>) -> (i32, i32, i32, i32) {
    %c0_i32 = arith.constant 0 : i32
    %c0_i32_0 = arith.constant 0 : i32
    return %arg0, %arg1, %c0_i32, %arg2 : i32, i32, i32, i32
  }
  func.func @transform_2(%arg0: i32, %arg1: i32, %arg2: i32, %arg3: memref<6xf32, #tpu.memory_space<smem>>) -> (i32, i32, i32, i32) {
    %c0_i32 = arith.constant 0 : i32
    %c0_i32_0 = arith.constant 0 : i32
    return %arg0, %arg1, %arg2, %c0_i32 : i32, i32, i32, i32
  }
  func.func @transform_3(%arg0: i32, %arg1: i32, %arg2: i32, %arg3: memref<6xf32, #tpu.memory_space<smem>>) -> (i32, i32, i32, i32) {
    %c0_i32 = arith.constant 0 : i32
    %c0_i32_0 = arith.constant 0 : i32
    return %arg0, %arg1, %c0_i32, %arg2 : i32, i32, i32, i32
  }
  func.func @transform_4(%arg0: i32, %arg1: i32, %arg2: i32, %arg3: memref<6xf32, #tpu.memory_space<smem>>) -> (i32, i32, i32, i32) {
    %c0_i32 = arith.constant 0 : i32
    %c0_i32_0 = arith.constant 0 : i32
    return %arg0, %arg1, %c0_i32, %arg2 : i32, i32, i32, i32
  }
  func.func @transform_5(%arg0: i32, %arg1: i32, %arg2: i32, %arg3: memref<6xf32, #tpu.memory_space<smem>>) -> (i32, i32, i32, i32) {
    %c0_i32 = arith.constant 0 : i32
    %c0_i32_0 = arith.constant 0 : i32
    return %arg0, %arg1, %c0_i32, %arg2 : i32, i32, i32, i32
  }
}

</mosaic_0001>

<llo_original>
// kernel: tpu_custom_call.1
$region0: #{tpu_custom_call.1}
  #allocation0 [shape = 'u32[]', space=smem, size = 0x4, offset = 0x4, fixed_abs, tag = 'smem constant byte address 0x4 - core index']
  #allocation1 [shape = 'u32[144,128]{1,0:T(1,128)}', space=vmem, size = 0x12000, scoped, tag = 'internal scratch']
  #allocation2 [shape = 's32[1]{0}', space=sflag, size = 0x4, scoped, tag = 'scoped memory for tpu_custom_call.1']
  #allocation3 [shape = 'u8[512]{0}', space=smem, size = 0x200, scoped, tag = 'prefetched SMEM operand 0']
  %s0 = inlined_call_operand.vmem [shape: f32[6], index: 0, kind: input, shape index: {}]
  %s1 = inlined_call_operand.vmem [shape: f32[2,3,1,1024], index: 1, kind: input, shape index: {}]
  %s2 = inlined_call_operand.vmem [shape: f32[2,3,1,256], index: 2, kind: input, shape index: {}]
  %s3 = inlined_call_operand.vmem [shape: f32[2,3,256,8], index: 3, kind: input, shape index: {}]
  %s4 = inlined_call_operand.hbm [shape: f32[2,3,1,1024], index: 4, kind: output, shape index: {0}]
  %s5 = inlined_call_operand.hbm [shape: f32[2,3,1,256], index: 5, kind: output, shape index: {1}]
  %s6 = inlined_call_operand.hbm [shape: s32[2,3,1,256], index: 6, kind: output, shape index: {2}]
  %7 = xla_tuple %s4, %s5, %s6
  %s8 = sld [smem:[#allocation0]]
  $region61: #{tpu_custom_call.1} parent=0
    _
  %s10 = ssub.s32 1, %s8
  %s11 = scalar_select 0, %s10, %s8
  %s12 = sshll.u32 %s0, 4
  %s13 = int_to_ptr.vmem [resolvable:$true] %s12
  %15 = dma.vmem_to_smem %s13, 16, [#allocation3], [#allocation2]
  %16 = dma.done [#allocation2], 16
  %17 = sfence
  $region1: #{tpu_custom_call.1} parent=0
    #allocation4 [shape = 'u8[4096]{0}', space=vmem, size = 0x1000, scoped, tag = 'output window, operand 0']
    #allocation5 [shape = 's32[2]{0}', space=sflag, size = 0x8, scoped, tag = 'scoped memory for tpu_custom_call.1']
    #allocation6 [shape = 'u8[1024]{0}', space=vmem, size = 0x400, scoped, tag = 'output window, operand 1']
    #allocation7 [shape = 's32[2]{0}', space=sflag, size = 0x8, scoped, tag = 'scoped memory for tpu_custom_call.1']
    #allocation8 [shape = 'u8[1024]{0}', space=vmem, size = 0x400, scoped, tag = 'output window, operand 2']
    %18 = vsyncpa [#allocation5], 0
    %s19 = scalar_lea.sflag [#allocation5], 1
    %20 = vsyncpa %s19, 0
    %21 = vsyncpa [#allocation7], 0
    %s22 = scalar_lea.sflag [#allocation7], 1
    %23 = vsyncpa %s22, 0
    loop: start=0, step=1, limit=14
    $region2: #{tpu_custom_call.1} parent=1 // loop_pre_header
      _
    $region3: #{tpu_custom_call.1} parent=1 // loop_header
      %s25 = sphi 0, %s29
      %p26 = scmp.ge.s32.totalorder %s25, 14
      %s32 = sphi 0, %s51
      %s33 = sphi 0, %s47
      %s34 = sphi 0, %s43
      %s35 = sphi 0, %s32
      %s36 = sphi 0, %s33
      %s37 = sphi 0, %s34
      %s38 = sphi 0, %s35
      %s39 = sphi 0, %s36
      %s40 = sphi 0, %s37
      %s58 = sphi 0, %s60
      %s61 = sphi 0, %s58
      %s62 = sphi 0, %s61
      %s78 = sphi 0, %s62
      %s88 = sphi 0, %s90
      %s91 = sphi 0, %s88
      %s92 = sphi 0, %s91
      %s108 = sphi 0, %s92
      %s118 = sphi 0, %s120
      %s121 = sphi 0, %s118
      %s122 = sphi 0, %s121
      %s138 = sphi 0, %s122
      %s148 = sphi 0, %s150
      %s151 = sphi 0, %s148
      %s152 = sphi 0, %s151
      %s168 = sphi 0, %s152
      %s178 = sphi 0, %s180
      %s181 = sphi 0, %s178
      %s182 = sphi 0, %s181
      %s198 = sphi 0, %s182
      %s208 = sphi 0, %s210
      %s211 = sphi 0, %s208
      %s212 = sphi 0, %s211
      %s228 = sphi 0, %s212
    $region4: #{tpu_custom_call.1} parent=1 // loop_header_branch
      %28 = sbr.rel (%p26) target = $region8
    $region5: #{tpu_custom_call.1} parent=1 // loop_body
      %s30 = ssub.s32 %s25, 1
      %s31 = ssub.s32 %s25, 2
      %s41 = sadd.s32 1, %s34
      %p42 = scmp.ge.s32.totalorder %s41, 2
      %s43 = scalar_select %p42, 0, %s41
      %s44 = sadd.s32 1, %s33
      %s45 = scalar_select %p42, %s44, %s33
      %p46 = scmp.ge.s32.totalorder %s45, 3
      %s47 = scalar_select %p46, 0, %s45
      %s48 = sadd.s32 1, %s32
      %s49 = scalar_select %p46, %s48, %s32
      %p50 = scmp.ge.s32.totalorder %s49, 2
      %s51 = scalar_select %p50, 0, %s49
      %s52 = ssub.s32 %s32, %s51
      %s53 = ssub.s32 %s33, %s47
      %s54 = sor.u32 %s52, %s53
      %s55 = ssub.s32 %s34, %s43
      %s56 = sor.u32 %s54, %s55
      %p57 = scmp.eq.s32.totalorder %s56, 0
      %s59 = sadd.s32 %s58, 1
      %s60 = scalar_select %p57, %s58, %s59
      %p63 = pneg %p57
      %p64 = scmp.eq.s32.totalorder %s25, 11
      %p65 = por %p63, %p64
      %p66 = scmp.ne.s32.totalorder %s58, %s61
      %p67 = scmp.eq.s32.totalorder %s25, 0
      %p68 = por %p66, %p67
      %p69 = scmp.ne.s32.totalorder %s58, %s61
      %p70 = scmp.eq.s32.totalorder %s30, 11
      %p71 = por %p69, %p70
      %p72 = scmp.ne.s32.totalorder %s61, %s62
      %p73 = scmp.eq.s32.totalorder %s30, 0
      %p74 = por %p72, %p73
      %p75 = scmp.ne.s32.totalorder %s61, %s62
      %p76 = scmp.eq.s32.totalorder %s31, 11
      %p77 = por %p75, %p76
      %p79 = scmp.ne.s32.totalorder %s62, %s78
      %p80 = scmp.eq.s32.totalorder %s31, 0
      %p81 = por %p79, %p80
      %s82 = ssub.s32 %s32, %s51
      %s83 = ssub.s32 %s33, %s47
      %s84 = sor.u32 %s82, %s83
      %s85 = ssub.s32 %s34, %s43
      %s86 = sor.u32 %s84, %s85
      %p87 = scmp.eq.s32.totalorder %s86, 0
      %s89 = sadd.s32 %s88, 1
      %s90 = scalar_select %p87, %s88, %s89
      %p93 = pneg %p87
      %p94 = scmp.eq.s32.totalorder %s25, 11
      %p95 = por %p93, %p94
      %p96 = scmp.ne.s32.totalorder %s88, %s91
      %p97 = scmp.eq.s32.totalorder %s25, 0
      %p98 = por %p96, %p97
      %p99 = scmp.ne.s32.totalorder %s88, %s91
      %p100 = scmp.eq.s32.totalorder %s30, 11
      %p101 = por %p99, %p100
      %p102 = scmp.ne.s32.totalorder %s91, %s92
      %p103 = scmp.eq.s32.totalorder %s30, 0
      %p104 = por %p102, %p103
      %p105 = scmp.ne.s32.totalorder %s91, %s92
      %p106 = scmp.eq.s32.totalorder %s31, 11
      %p107 = por %p105, %p106
      %p109 = scmp.ne.s32.totalorder %s92, %s108
      %p110 = scmp.eq.s32.totalorder %s31, 0
      %p111 = por %p109, %p110
      %s112 = ssub.s32 %s32, %s51
      %s113 = ssub.s32 %s33, %s47
      %s114 = sor.u32 %s112, %s113
      %s115 = ssub.s32 %s34, %s43
      %s116 = sor.u32 %s114, %s115
      %p117 = scmp.eq.s32.totalorder %s116, 0
      %s119 = sadd.s32 %s118, 1
      %s120 = scalar_select %p117, %s118, %s119
      %p123 = pneg %p117
      %p124 = scmp.eq.s32.totalorder %s25, 11
      %p125 = por %p123, %p124
      %p126 = scmp.ne.s32.totalorder %s118, %s121
      %p127 = scmp.eq.s32.totalorder %s25, 0
      %p128 = por %p126, %p127
      %p129 = scmp.ne.s32.totalorder %s118, %s121
      %p130 = scmp.eq.s32.totalorder %s30, 11
      %p131 = por %p129, %p130
      %p132 = scmp.ne.s32.totalorder %s121, %s122
      %p133 = scmp.eq.s32.totalorder %s30, 0
      %p134 = por %p132, %p133
      %p135 = scmp.ne.s32.totalorder %s121, %s122
      %p136 = scmp.eq.s32.totalorder %s31, 11
      %p137 = por %p135, %p136
      %p139 = scmp.ne.s32.totalorder %s122, %s138
      %p140 = scmp.eq.s32.totalorder %s31, 0
      %p141 = por %p139, %p140
      %s142 = ssub.s32 %s32, %s51
      %s143 = ssub.s32 %s33, %s47
      %s144 = sor.u32 %s142, %s143
      %s145 = ssub.s32 %s34, %s43
      %s146 = sor.u32 %s144, %s145
      %p147 = scmp.eq.s32.totalorder %s146, 0
      %s149 = sadd.s32 %s148, 1
      %s150 = scalar_select %p147, %s148, %s149
      %p153 = pneg %p147
      %p154 = scmp.eq.s32.totalorder %s25, 11
      %p155 = por %p153, %p154
      %p156 = scmp.ne.s32.totalorder %s148, %s151
      %p157 = scmp.eq.s32.totalorder %s25, 0
      %p158 = por %p156, %p157
      %p159 = scmp.ne.s32.totalorder %s148, %s151
      %p160 = scmp.eq.s32.totalorder %s30, 11
      %p161 = por %p159, %p160
      %p162 = scmp.ne.s32.totalorder %s151, %s152
      %p163 = scmp.eq.s32.totalorder %s30, 0
      %p164 = por %p162, %p163
      %p165 = scmp.ne.s32.totalorder %s151, %s152
      %p166 = scmp.eq.s32.totalorder %s31, 11
      %p167 = por %p165, %p166
      %p169 = scmp.ne.s32.totalorder %s152, %s168
      %p170 = scmp.eq.s32.totalorder %s31, 0
      %p171 = por %p169, %p170
      %s172 = ssub.s32 %s32, %s51
      %s173 = ssub.s32 %s33, %s47
      %s174 = sor.u32 %s172, %s173
      %s175 = ssub.s32 %s34, %s43
      %s176 = sor.u32 %s174, %s175
      %p177 = scmp.eq.s32.totalorder %s176, 0
      %s179 = sadd.s32 %s178, 1
      %s180 = scalar_select %p177, %s178, %s179
      %p183 = pneg %p177
      %p184 = scmp.eq.s32.totalorder %s25, 11
      %p185 = por %p183, %p184
      %p186 = scmp.ne.s32.totalorder %s178, %s181
      %p187 = scmp.eq.s32.totalorder %s25, 0
      %p188 = por %p186, %p187
      %p189 = scmp.ne.s32.totalorder %s178, %s181
      %p190 = scmp.eq.s32.totalorder %s30, 11
      %p191 = por %p189, %p190
      %p192 = scmp.ne.s32.totalorder %s181, %s182
      %p193 = scmp.eq.s32.totalorder %s30, 0
      %p194 = por %p192, %p193
      %p195 = scmp.ne.s32.totalorder %s181, %s182
      %p196 = scmp.eq.s32.totalorder %s31, 11
      %p197 = por %p195, %p196
      %p199 = scmp.ne.s32.totalorder %s182, %s198
      %p200 = scmp.eq.s32.totalorder %s31, 0
      %p201 = por %p199, %p200
      %s202 = ssub.s32 %s32, %s51
      %s203 = ssub.s32 %s33, %s47
      %s204 = sor.u32 %s202, %s203
      %s205 = ssub.s32 %s34, %s43
      %s206 = sor.u32 %s204, %s205
      %p207 = scmp.eq.s32.totalorder %s206, 0
      %s209 = sadd.s32 %s208, 1
      %s210 = scalar_select %p207, %s208, %s209
      %p213 = pneg %p207
      %p214 = scmp.eq.s32.totalorder %s25, 11
      %p215 = por %p213, %p214
      %p216 = scmp.ne.s32.totalorder %s208, %s211
      %p217 = scmp.eq.s32.totalorder %s25, 0
      %p218 = por %p216, %p217
      %p219 = scmp.ne.s32.totalorder %s208, %s211
      %p220 = scmp.eq.s32.totalorder %s30, 11
      %p221 = por %p219, %p220
      %p222 = scmp.ne.s32.totalorder %s211, %s212
      %p223 = scmp.eq.s32.totalorder %s30, 0
      %p224 = por %p222, %p223
      %p225 = scmp.ne.s32.totalorder %s211, %s212
      %p226 = scmp.eq.s32.totalorder %s31, 11
      %p227 = por %p225, %p226
      %p229 = scmp.ne.s32.totalorder %s212, %s228
      %p230 = scmp.eq.s32.totalorder %s31, 0
      %p231 = por %p229, %p230
      %p232 = scmp.le.s32.totalorder 1, %s25
      %p233 = scmp.lt.s32.totalorder %s25, 13
      %p234 = pnand %p232, %p233
      %p235 = pneg %p234
      // Predicated region
      $region9: #{tpu_custom_call.1} parent=5 // pred_check
        _
      $region10: #{tpu_custom_call.1} parent=5 // pred_check_branch
        %237 = sbr.rel (%p234) target = $region12
      $region11: #{tpu_custom_call.1} parent=5 // pred_region
        %s238 = ssub.s32 %s25, 1
      $region12: #{tpu_custom_call.1} parent=5 // pred_fallthru
        _
      %p239 = scmp.lt.s32.totalorder %s25, 12
      // Predicated region
      $region13: #{tpu_custom_call.1} parent=5 // pred_check
        %p240 = pneg %p239
      $region14: #{tpu_custom_call.1} parent=5 // pred_check_branch
        %242 = sbr.rel (%p240) target = $region16
      $region15: #{tpu_custom_call.1} parent=5 // pred_region
        // Predicated region
        $region17: #{tpu_custom_call.1} parent=15 // pred_check
          %p243 = pneg %p68
        $region18: #{tpu_custom_call.1} parent=15 // pred_check_branch
          %245 = sbr.rel (%p243) target = $region20
        $region19: #{tpu_custom_call.1} parent=15 // pred_region
          %s246 = smul.u32 4, %s34
          %p247 = scmp.lt.s32.totalorder %s32, 1
          %s248 = scalar_select %p247, %s32, 1
          %p249 = scmp.lt.s32.totalorder %s33, 2
          %s250 = scalar_select %p249, %s33, 2
          %p251 = scmp.lt.s32.totalorder %s246, 7
          %s252 = scalar_select %p251, %s246, 7
          %s253 = smul.addr %s250, 8
          %s254 = sadd.s32 %s252, %s253
          %s255 = smul.addr %s248, 24
          %s256 = sadd.s32 %s254, %s255
          %s257 = scalar_lea.vmem %s1, %s256
          %s258 = smul.u32 4, %s34
        $region20: #{tpu_custom_call.1} parent=15 // pred_fallthru
          _
        // Predicated region
        $region21: #{tpu_custom_call.1} parent=15 // pred_check
          %p259 = pneg %p98
        $region22: #{tpu_custom_call.1} parent=15 // pred_check_branch
          %261 = sbr.rel (%p259) target = $region24
        $region23: #{tpu_custom_call.1} parent=15 // pred_region
          %p262 = scmp.lt.s32.totalorder %s32, 1
          %s263 = scalar_select %p262, %s32, 1
          %p264 = scmp.lt.s32.totalorder %s33, 2
          %s265 = scalar_select %p264, %s33, 2
          %p266 = scmp.lt.s32.totalorder %s34, 1
          %s267 = scalar_select %p266, %s34, 1
          %s268 = smul.addr %s265, 2
          %s269 = sadd.s32 %s267, %s268
          %s270 = smul.addr %s263, 6
          %s271 = sadd.s32 %s269, %s270
          %s272 = scalar_lea.vmem %s2, %s271
        $region24: #{tpu_custom_call.1} parent=15 // pred_fallthru
          _
        // Predicated region
        $region25: #{tpu_custom_call.1} parent=15 // pred_check
          %p273 = pneg %p128
        $region26: #{tpu_custom_call.1} parent=15 // pred_check_branch
          %275 = sbr.rel (%p273) target = $region28
        $region27: #{tpu_custom_call.1} parent=15 // pred_region
          %s276 = smul.u32 16, %s34
          %p277 = scmp.lt.s32.totalorder %s32, 1
          %s278 = scalar_select %p277, %s32, 1
          %p279 = scmp.lt.s32.totalorder %s33, 2
          %s280 = scalar_select %p279, %s33, 2
          %p281 = scmp.lt.s32.totalorder %s276, 31
          %s282 = scalar_select %p281, %s276, 31
          %s283 = smul.addr %s280, 32
          %s284 = sadd.s32 %s282, %s283
          %s285 = smul.addr %s278, 96
          %s286 = sadd.s32 %s284, %s285
          %s287 = smul.addr %s286, 8
          %s288 = scalar_lea.vmem %s3, %s287
          %s289 = smul.u32 16, %s34
        $region28: #{tpu_custom_call.1} parent=15 // pred_fallthru
          _
      $region16: #{tpu_custom_call.1} parent=5 // pred_fallthru
        _
      %p290 = scmp.le.s32.totalorder 1, %s25
      %p291 = scmp.lt.s32.totalorder %s25, 13
      %p292 = pnand %p290, %p291
      %p293 = pneg %p292
      // Predicated region
      $region29: #{tpu_custom_call.1} parent=5 // pred_check
        _
      $region30: #{tpu_custom_call.1} parent=5 // pred_check_branch
        %295 = sbr.rel (%p292) target = $region32
      $region31: #{tpu_custom_call.1} parent=5 // pred_region
        %s296 = ssub.s32 %s25, 1
        %s297 = smul.u32 4, %s37
        %p298 = scmp.lt.s32.totalorder %s35, 1
        %s299 = scalar_select %p298, %s35, 1
        %p300 = scmp.lt.s32.totalorder %s36, 2
        %s301 = scalar_select %p300, %s36, 2
        %p302 = scmp.lt.s32.totalorder %s297, 7
        %s303 = scalar_select %p302, %s297, 7
        %s304 = smul.addr %s301, 8
        %s305 = sadd.s32 %s303, %s304
        %s306 = smul.addr %s299, 24
        %s307 = sadd.s32 %s305, %s306
        %s308 = scalar_lea.vmem %s1, %s307
        %p309 = pneg %p74
        %p310 = pneg %p71
        %p311 = scmp.lt.s32.totalorder %s35, 1
        %s312 = scalar_select %p311, %s35, 1
        %p313 = scmp.lt.s32.totalorder %s36, 2
        %s314 = scalar_select %p313, %s36, 2
        %p315 = scmp.lt.s32.totalorder %s37, 1
        %s316 = scalar_select %p315, %s37, 1
        %s317 = smul.addr %s314, 2
        %s318 = sadd.s32 %s316, %s317
        %s319 = smul.addr %s312, 6
        %s320 = sadd.s32 %s318, %s319
        %s321 = scalar_lea.vmem %s2, %s320
        %p322 = pneg %p104
        %p323 = pneg %p101
        %s324 = smul.u32 16, %s37
        %p325 = scmp.lt.s32.totalorder %s35, 1
        %s326 = scalar_select %p325, %s35, 1
        %p327 = scmp.lt.s32.totalorder %s36, 2
        %s328 = scalar_select %p327, %s36, 2
        %p329 = scmp.lt.s32.totalorder %s324, 31
        %s330 = scalar_select %p329, %s324, 31
        %s331 = smul.addr %s328, 32
        %s332 = sadd.s32 %s330, %s331
        %s333 = smul.addr %s326, 96
        %s334 = sadd.s32 %s332, %s333
        %s335 = smul.addr %s334, 8
        %s336 = scalar_lea.vmem %s3, %s335
        %p337 = pneg %p134
        %p338 = pneg %p131
        %p339 = pneg %p164
        %p340 = pneg %p161
        %s341 = sand.u32 %s151, 1
        %s342 = scalar_lea.sflag [#allocation5], %s341
        %s343 = sand.u32 %s151, 1
        %s344 = smul.addr %s343, 4
        %s345 = scalar_lea.vmem [#allocation4], %s344
        %p346 = pneg %p194
        %p347 = pneg %p191
        %s348 = sand.u32 %s30, 1
        %s349 = scalar_lea.sflag [#allocation7], %s348
        %s350 = sand.u32 %s181, 1
        %s351 = scalar_lea.vmem [#allocation6], %s350
        %p352 = pneg %p224
        %p353 = pneg %p221
        %s354 = sand.u32 %s30, 1
        %s355 = scalar_lea.sflag [#allocation7], %s354
        %s356 = sand.u32 %s211, 1
        %s357 = scalar_lea.vmem [#allocation8], %s356
        %s358 = smul.u32 4, %s37
        %p359 = scmp.lt.s32.totalorder %s35, 1
        %s360 = scalar_select %p359, %s35, 1
        %p361 = scmp.lt.s32.totalorder %s36, 2
        %s362 = scalar_select %p361, %s36, 2
        %p363 = scmp.lt.s32.totalorder %s358, 7
        %s364 = scalar_select %p363, %s358, 7
        %s365 = smul.addr %s362, 8
        %s366 = sadd.s32 %s364, %s365
        %s367 = smul.addr %s360, 24
        %s368 = sadd.s32 %s366, %s367
        %s369 = scalar_lea.vmem %s1, %s368
        %s370 = smul.u32 4, %s37
        %p371 = scmp.lt.s32.totalorder %s35, 1
        %s372 = scalar_select %p371, %s35, 1
        %p373 = scmp.lt.s32.totalorder %s36, 2
        %s374 = scalar_select %p373, %s36, 2
        %p375 = scmp.lt.s32.totalorder %s37, 1
        %s376 = scalar_select %p375, %s37, 1
        %s377 = smul.addr %s374, 2
        %s378 = sadd.s32 %s376, %s377
        %s379 = smul.addr %s372, 6
        %s380 = sadd.s32 %s378, %s379
        %s381 = scalar_lea.vmem %s2, %s380
        %s382 = smul.u32 16, %s37
        %p383 = scmp.lt.s32.totalorder %s35, 1
        %s384 = scalar_select %p383, %s35, 1
        %p385 = scmp.lt.s32.totalorder %s36, 2
        %s386 = scalar_select %p385, %s36, 2
        %p387 = scmp.lt.s32.totalorder %s382, 31
        %s388 = scalar_select %p387, %s382, 31
        %s389 = smul.addr %s386, 32
        %s390 = sadd.s32 %s388, %s389
        %s391 = smul.addr %s384, 96
        %s392 = sadd.s32 %s390, %s391
        %s393 = smul.addr %s392, 8
        %s394 = scalar_lea.vmem %s3, %s393
        %s395 = smul.u32 16, %s37
        %s396 = smul.u32 4, %s37
        %s397 = smul.u32 %s36, 2
        %s398 = sld [smem:[#allocation3 + %s397]]
        %s399 = sadd.s32 %s397, 1
        %s400 = sld [smem:[#allocation3 + %s399]]
        %v401 = vlaneseq
        %v402 = vand.u32 %v401, 127
        %v403 = vadd.s32 %v402, 128
        %v404 = vadd.s32 %v402, 256
        %v405 = vadd.s32 %v402, 384
        %v406 = vand.u32 %v402, 3
        %v407 = vand.u32 %v403, 3
        %v408 = vand.u32 %v404, 3
        %v409 = vand.u32 %v405, 3
        %v410 = vshra.s32 %v402, 2
        %v411 = vshra.s32 %v403, 2
        %v412 = vshra.s32 %v404, 2
        %v413 = vshra.s32 %v405, 2
        %s414 = smul.u32 %s37, 128
        %v415 = vstv %s414
        %v416 = vadd.s32 %v410, %v415
        %v417 = vadd.s32 %v411, %v415
        %v418 = vadd.s32 %v412, %v415
        %v419 = vadd.s32 %v413, %v415
        %v420 = vcvt.s32.f32 %v416
        %v421 = vcvt.s32.f32 %v417
        %v422 = vcvt.s32.f32 %v418
        %v423 = vcvt.s32.f32 %v419
        %v424 = vadd.f32 %v420, 0.5
        %v425 = vadd.f32 %v421, 0.5
        %v426 = vadd.f32 %v422, 0.5
        %v427 = vadd.f32 %v423, 0.5
        %v428 = vmul.f32 %v424, 0.0625
        %v429 = vmul.f32 %v425, 0.0625
        %v430 = vmul.f32 %v426, 0.0625
        %v431 = vmul.f32 %v427, 0.0625
        %v432 = vfloor.f32 %v428
        %v433 = vfloor.f32 %v429
        %v434 = vfloor.f32 %v430
        %v435 = vfloor.f32 %v431
        %v436 = vmul.f32 %v432, 16.0
        %v437 = vmul.f32 %v433, 16.0
        %v438 = vmul.f32 %v434, 16.0
        %v439 = vmul.f32 %v435, 16.0
        %v440 = vsub.f32 %v420, %v436
        %v441 = vsub.f32 %v421, %v437
        %v442 = vsub.f32 %v422, %v438
        %v443 = vsub.f32 %v423, %v439
        %v444 = vld [vmem:[%s369] sm:$0xf]
        %v445 = vxor.u32 %v444, 2147483648
        %v446 = vmul.f32 %v445, 1.442695
        %v447 = vpow.pop %v446
        %v448 = vadd.f32 %v447, 1.0
        %v449 = vrcp.pop %v448
        %v450 = vmul.f32 1.0, %v449
        %vm451 = vcmp.eq.s32.totalorder %v406, 0
        %vm452 = vcmp.eq.s32.totalorder %v407, 0
        %vm453 = vcmp.eq.s32.totalorder %v408, 0
        %vm454 = vcmp.eq.s32.totalorder %v409, 0
        %vm455 = vcmp.eq.s32.totalorder %v406, 1
        %vm456 = vcmp.eq.s32.totalorder %v407, 1
        %vm457 = vcmp.eq.s32.totalorder %v408, 1
        %vm458 = vcmp.eq.s32.totalorder %v409, 1
        %v459 = vsel %vm455, %v432, 0.0
        %v460 = vsel %vm456, %v433, 0.0
        %v461 = vsel %vm457, %v434, 0.0
        %v462 = vsel %vm458, %v435, 0.0
        %v463 = vsel %vm451, %v440, %v459
        %v464 = vsel %vm452, %v441, %v460
        %v465 = vsel %vm453, %v442, %v461
        %v466 = vsel %vm454, %v443, %v462
        %vm467 = vcmp.eq.s32.totalorder %v406, 2
        %vm468 = vcmp.eq.s32.totalorder %v407, 2
        %vm469 = vcmp.eq.s32.totalorder %v408, 2
        %vm470 = vcmp.eq.s32.totalorder %v409, 2
        %v471 = vstv %s398
        %v472 = vstv %s400
        %v473 = vsel %vm467, %v471, %v472
        %v474 = vsel %vm468, %v471, %v472
        %v475 = vsel %vm469, %v471, %v472
        %v476 = vsel %vm470, %v471, %v472
        %v477 = vmul.f32 %v450, 2.0
        %v478 = vsub.f32 %v477, 0.5
        %v483 = vcombine.low %v463, %v464
        %v484 = vcombine.low %v465, %v466
        %v486 = vunpack.c.l.s4 1966171168
        %v487 = vunpack.c.0.s8 %v486
        %v488 = vlaneseq
        %v489 = vshrl.u32 %v488, 7
        %v490 = vsub.s32 %v487, %v489
        %v491 = vrot.slane %v483, %v490
        %v493 = vunpack.c.l.s4 1966171168
        %v494 = vunpack.c.0.s8 %v493
        %v495 = vlaneseq
        %v496 = vshrl.u32 %v495, 7
        %v497 = vsub.s32 %v494, %v496
        %v498 = vrot.slane %v484, %v497
        %v499 = vcombine.low %v491, %v498
        %v501 = vunpack.c.l.s4 1966171168
        %v502 = vunpack.c.0.s8 %v501
        %v503 = vlaneseq
        %v504 = vshrl.u32 %v503, 7
        %v505 = vsub.s32 %v502, %v504
        %v506 = vrot.slane %v499, %v505
        %v508 = vadd.f32 %v478, %v506
        %v509 = vmul.f32 %v508, 8.0
        %v510 = vmul.f32 %v477, %v477
        %v515 = vcombine.low %v473, %v474
        %v516 = vcombine.low %v475, %v476
        %v518 = vunpack.c.l.s4 1966171168
        %v519 = vunpack.c.0.s8 %v518
        %v520 = vlaneseq
        %v521 = vshrl.u32 %v520, 7
        %v522 = vsub.s32 %v519, %v521
        %v523 = vrot.slane %v515, %v522
        %v525 = vunpack.c.l.s4 1966171168
        %v526 = vunpack.c.0.s8 %v525
        %v527 = vlaneseq
        %v528 = vshrl.u32 %v527, 7
        %v529 = vsub.s32 %v526, %v528
        %v530 = vrot.slane %v516, %v529
        %v531 = vcombine.low %v523, %v530
        %v533 = vunpack.c.l.s4 1966171168
        %v534 = vunpack.c.0.s8 %v533
        %v535 = vlaneseq
        %v536 = vshrl.u32 %v535, 7
        %v537 = vsub.s32 %v534, %v536
        %v538 = vrot.slane %v531, %v537
        %v540 = vmul.f32 %v510, %v538
        %vm541 = vcmp.lt.s32.totalorder %v406, 2
        %vm542 = vcmp.lt.s32.totalorder %v407, 2
        %vm543 = vcmp.lt.s32.totalorder %v408, 2
        %vm544 = vcmp.lt.s32.totalorder %v409, 2
        %v546 = vlaneseq
        %v547 = vshrl.u32 %v546, 7
        %v548 = vsub.s32 0, %v547
        %v549 = vrot.slane %v509, %v548
        %v550 = vlaneseq
        %v551 = vshrl.u32 %v550, 7
        %v552 = vsub.s32 1, %v551
        %v553 = vrot.slane %v509, %v552
        %v554 = vlaneseq
        %v555 = vshrl.u32 %v554, 7
        %v556 = vsub.s32 2, %v555
        %v557 = vrot.slane %v509, %v556
        %v558 = vlaneseq
        %v559 = vshrl.u32 %v558, 7
        %v560 = vsub.s32 3, %v559
        %v561 = vrot.slane %v509, %v560
        %v567 = vlaneseq
        %v568 = vshrl.u32 %v567, 7
        %v569 = vsub.s32 0, %v568
        %v570 = vrot.slane %v540, %v569
        %v571 = vlaneseq
        %v572 = vshrl.u32 %v571, 7
        %v573 = vsub.s32 1, %v572
        %v574 = vrot.slane %v540, %v573
        %v575 = vlaneseq
        %v576 = vshrl.u32 %v575, 7
        %v577 = vsub.s32 2, %v576
        %v578 = vrot.slane %v540, %v577
        %v579 = vlaneseq
        %v580 = vshrl.u32 %v579, 7
        %v581 = vsub.s32 3, %v580
        %v582 = vrot.slane %v540, %v581
        %v587 = vsel %vm541, %v549, %v570
        %v588 = vsel %vm542, %v553, %v574
        %v589 = vsel %vm543, %v557, %v578
        %v590 = vsel %vm544, %v561, %v582
        %v595 = vcombine.low %v587, %v588
        %v596 = vcombine.low %v589, %v590
        %v598 = vunpack.c.l.s4 1966171168
        %v599 = vunpack.c.0.s8 %v598
        %v600 = vlaneseq
        %v601 = vshrl.u32 %v600, 7
        %v602 = vsub.s32 %v599, %v601
        %v603 = vrot.slane %v595, %v602
        %v605 = vunpack.c.l.s4 1966171168
        %v606 = vunpack.c.0.s8 %v605
        %v607 = vlaneseq
        %v608 = vshrl.u32 %v607, 7
        %v609 = vsub.s32 %v606, %v608
        %v610 = vrot.slane %v596, %v609
        %v611 = vcombine.low %v603, %v610
        %v613 = vunpack.c.l.s4 1966171168
        %v614 = vunpack.c.0.s8 %v613
        %v615 = vlaneseq
        %v616 = vshrl.u32 %v615, 7
        %v617 = vsub.s32 %v614, %v616
        %v618 = vrot.slane %v611, %v617
        %v620 = vlaneseq
        %vm621 = vcmp.ge.s32.totalorder %v620, 0
        %vm622 = vcmp.lt.s32.totalorder %v620, 512
        %vm623 = vmand %vm621, %vm622
        %624 = vst.msk [vmem:[%s345] sm:$0xf] %vm623, %v618
        %v625 = vld [vmem:[%s394] sm:$0xff]
        %v626 = vld [vmem:[%s394 + $0x8] sm:$0xff]
        %v627 = vld [vmem:[%s394 + $0x10] sm:$0xff]
        %v628 = vld [vmem:[%s394 + $0x18] sm:$0xff]
        %v629 = vld [vmem:[%s394 + $0x20] sm:$0xff]
        %v630 = vld [vmem:[%s394 + $0x28] sm:$0xff]
        %v631 = vld [vmem:[%s394 + $0x30] sm:$0xff]
        %v632 = vld [vmem:[%s394 + $0x38] sm:$0xff]
        %v633 = vld [vmem:[%s394 + $0x40] sm:$0xff]
        %v634 = vld [vmem:[%s394 + $0x48] sm:$0xff]
        %v635 = vld [vmem:[%s394 + $0x50] sm:$0xff]
        %v636 = vld [vmem:[%s394 + $0x58] sm:$0xff]
        %v637 = vld [vmem:[%s394 + $0x60] sm:$0xff]
        %v638 = vld [vmem:[%s394 + $0x68] sm:$0xff]
        %v639 = vld [vmem:[%s394 + $0x70] sm:$0xff]
        %v640 = vld [vmem:[%s394 + $0x78] sm:$0xff]
        %641 = vxpose.xlu0.b32.start [1/16] %v625, 128
        %642 = vxpose.xlu0.b32.cont [2/16] %v626, 128
        %643 = vxpose.xlu0.b32.cont [3/16] %v627, 128
        %644 = vxpose.xlu0.b32.cont [4/16] %v628, 128
        %645 = vxpose.xlu0.b32.cont [5/16] %v629, 128
        %646 = vxpose.xlu0.b32.cont [6/16] %v630, 128
        %647 = vxpose.xlu0.b32.cont [7/16] %v631, 128
        %648 = vxpose.xlu0.b32.cont [8/16] %v632, 128
        %649 = vxpose.xlu0.b32.cont [9/16] %v633, 128
        %650 = vxpose.xlu0.b32.cont [10/16] %v634, 128
        %651 = vxpose.xlu0.b32.cont [11/16] %v635, 128
        %652 = vxpose.xlu0.b32.cont [12/16] %v636, 128
        %653 = vxpose.xlu0.b32.cont [13/16] %v637, 128
        %654 = vxpose.xlu0.b32.cont [14/16] %v638, 128
        %655 = vxpose.xlu0.b32.cont [15/16] %v639, 128
        %656 = vxpose.xlu0.b32.end [16/16] %v640, 128
        %v657 = vpop.trf.xlu0
        %v658 = vpop.trf.xlu0
        %v659 = vpop.trf.xlu0
        %v660 = vpop.trf.xlu0
        %v661 = vpop.trf.xlu0
        %v662 = vpop.trf.xlu0
        %v663 = vpop.trf.xlu0
        %v664 = vpop.trf.xlu0
        %v665 = vpop.trf.xlu0
        %v666 = vpop.trf.xlu0
        %v667 = vpop.trf.xlu0
        %v668 = vpop.trf.xlu0
        %v669 = vpop.trf.xlu0
        %v670 = vpop.trf.xlu0
        %v671 = vpop.trf.xlu0
        %v672 = vpop.trf.xlu0
        %v673 = vrot.slane %v657, 4
        %v674 = vmax.f32 %v657, %v673
        %v675 = vrot.slane %v674, 2
        %v676 = vmax.f32 %v674, %v675
        %v677 = vrot.slane %v676, 1
        %v678 = vmax.f32 %v676, %v677
        %v679 = vlaneseq
        %v680 = vshrl.u32 %v679, 7
        %v681 = vcvt.s32.f32 %v680
        %vm682 = vcmp.ge.f32.partialorder %v657, %v678
        %v683 = vsel %vm682, %v681, 8.0
        %v684 = vrot.slane %v683, 4
        %v685 = vmin.f32 %v683, %v684
        %v686 = vrot.slane %v685, 2
        %v687 = vmin.f32 %v685, %v686
        %v688 = vrot.slane %v687, 1
        %v689 = vmin.f32 %v687, %v688
        %v690 = vld [vmem:[%s381] sm:$0x1]
        %v691 = vxor.u32 %v690, 2147483648
        %v692 = vmul.f32 %v691, 1.442695
        %v693 = vpow.pop %v692
        %v694 = vadd.f32 %v693, 1.0
        %v695 = vrcp.pop %v694
        %v696 = vmul.f32 1.0, %v695
        %v697 = vxor.u32 %v678, 2147483648
        %v698 = vmul.f32 %v697, 1.442695
        %v699 = vpow.pop %v698
        %v700 = vadd.f32 %v699, 1.0
        %v701 = vrcp.pop %v700
        %v702 = vmul.f32 1.0, %v701
        %v703 = vmul.f32 %v696, %v702
        %704 = vst [vmem:[%s351] sm:$0x1] %v703
        %v705 = vcvt.f32.s32.to.zero.pseudo %v689
        %706 = vst [vmem:[%s357] sm:$0x1] %v705
        %s707 = sand.u32 %s151, 1
        %s708 = scalar_lea.sflag [#allocation5], %s707
        %s709 = sand.u32 %s151, 1
        %s710 = smul.addr %s709, 4
        %s711 = scalar_lea.vmem [#allocation4], %s710
        %s712 = sand.u32 %s30, 1
        %s713 = scalar_lea.sflag [#allocation7], %s712
        %s714 = sand.u32 %s181, 1
        %s715 = scalar_lea.vmem [#allocation6], %s714
        %s716 = sand.u32 %s30, 1
        %s717 = scalar_lea.sflag [#allocation7], %s716
        %s718 = sand.u32 %s211, 1
        %s719 = scalar_lea.vmem [#allocation8], %s718
        // Predicated region
        $region33: #{tpu_custom_call.1} parent=31 // pred_check
          %p720 = pneg %p161
        $region34: #{tpu_custom_call.1} parent=31 // pred_check_branch
          %722 = sbr.rel (%p720) target = $region36
        $region35: #{tpu_custom_call.1} parent=31 // pred_region
          %s723 = smul.u32 4, %s37
          %s725 = ssub.s32 64, 64
          %726 = vsyncadd %s708, %s725
          %s727 = smul.addr %s36, 8
          %s728 = sadd.s32 %s723, %s727
          %s729 = smul.addr %s35, 24
          %s730 = sadd.s32 %s728, %s729
          %s731 = smul.addr %s730, 16
          %s732 = scalar_lea.hbm %s4, %s731
          %s734 = sshll.u32 %s711, 4
          %s735 = int_to_ptr.vmem [resolvable:$true] %s734
          %737 = dma.vmem_to_hbm [thread:$0]  %s735, 64, %s732, %s708
        $region36: #{tpu_custom_call.1} parent=31 // pred_fallthru
          _
        // Predicated region
        $region37: #{tpu_custom_call.1} parent=31 // pred_check
          %p738 = pneg %p191
        $region38: #{tpu_custom_call.1} parent=31 // pred_check_branch
          %740 = sbr.rel (%p738) target = $region40
        $region39: #{tpu_custom_call.1} parent=31 // pred_region
          %s742 = ssub.s32 16, 16
          %743 = vsyncadd %s713, %s742
          %s744 = smul.addr %s36, 2
          %s745 = sadd.s32 %s37, %s744
          %s746 = smul.addr %s35, 6
          %s747 = sadd.s32 %s745, %s746
          %s748 = smul.addr %s747, 16
          %s749 = scalar_lea.hbm %s5, %s748
          %s751 = sshll.u32 %s715, 4
          %s752 = int_to_ptr.vmem [resolvable:$true] %s751
          %754 = dma.vmem_to_hbm [thread:$0]  %s752, 16, %s749, %s713
        $region40: #{tpu_custom_call.1} parent=31 // pred_fallthru
          _
        // Predicated region
        $region41: #{tpu_custom_call.1} parent=31 // pred_check
          %p755 = pneg %p221
        $region42: #{tpu_custom_call.1} parent=31 // pred_check_branch
          %757 = sbr.rel (%p755) target = $region44
        $region43: #{tpu_custom_call.1} parent=31 // pred_region
          %s759 = ssub.s32 16, 16
          %760 = vsyncadd %s717, %s759
          %s761 = smul.addr %s36, 2
          %s762 = sadd.s32 %s37, %s761
          %s763 = smul.addr %s35, 6
          %s764 = sadd.s32 %s762, %s763
          %s765 = smul.addr %s764, 16
          %s766 = scalar_lea.hbm %s6, %s765
          %s768 = sshll.u32 %s719, 4
          %s769 = int_to_ptr.vmem [resolvable:$true] %s768
          %771 = dma.vmem_to_hbm [thread:$0]  %s769, 16, %s766, %s717
        $region44: #{tpu_custom_call.1} parent=31 // pred_fallthru
          _
      $region32: #{tpu_custom_call.1} parent=5 // pred_fallthru
        _
      %p772 = scmp.le.s32.totalorder 2, %s25
      // Predicated region
      $region45: #{tpu_custom_call.1} parent=5 // pred_check
        %p773 = pneg %p772
      $region46: #{tpu_custom_call.1} parent=5 // pred_check_branch
        %775 = sbr.rel (%p773) target = $region48
      $region47: #{tpu_custom_call.1} parent=5 // pred_region
        %s776 = ssub.s32 %s25, 2
        // Predicated region
        $region49: #{tpu_custom_call.1} parent=47 // pred_check
          %p777 = pneg %p167
        $region50: #{tpu_custom_call.1} parent=47 // pred_check_branch
          %779 = sbr.rel (%p777) target = $region52
        $region51: #{tpu_custom_call.1} parent=47 // pred_region
          %s780 = sand.u32 %s152, 1
          %s781 = scalar_lea.sflag [#allocation5], %s780
          %s782 = sand.u32 %s152, 1
          %s783 = smul.addr %s782, 4
          %s784 = scalar_lea.vmem [#allocation4], %s783
          %785 = dma.done %s781, 64
        $region52: #{tpu_custom_call.1} parent=47 // pred_fallthru
          _
        // Predicated region
        $region53: #{tpu_custom_call.1} parent=47 // pred_check
          %p786 = pneg %p197
        $region54: #{tpu_custom_call.1} parent=47 // pred_check_branch
          %788 = sbr.rel (%p786) target = $region56
        $region55: #{tpu_custom_call.1} parent=47 // pred_region
          %s789 = sand.u32 %s31, 1
          %s790 = scalar_lea.sflag [#allocation7], %s789
          %s791 = sand.u32 %s182, 1
          %s792 = scalar_lea.vmem [#allocation6], %s791
          %793 = dma.done %s790, 16
        $region56: #{tpu_custom_call.1} parent=47 // pred_fallthru
          _
        // Predicated region
        $region57: #{tpu_custom_call.1} parent=47 // pred_check
          %p794 = pneg %p227
        $region58: #{tpu_custom_call.1} parent=47 // pred_check_branch
          %796 = sbr.rel (%p794) target = $region60
        $region59: #{tpu_custom_call.1} parent=47 // pred_region
          %s797 = sand.u32 %s31, 1
          %s798 = scalar_lea.sflag [#allocation7], %s797
          %s799 = sand.u32 %s212, 1
          %s800 = scalar_lea.vmem [#allocation8], %s799
          %801 = dma.done %s798, 16
        $region60: #{tpu_custom_call.1} parent=47 // pred_fallthru
          _
      $region48: #{tpu_custom_call.1} parent=5 // pred_fallthru
        _
    $region6: #{tpu_custom_call.1} parent=1 // loop_footer
      %s29 = sadd.s32 1, %s25
    $region7: #{tpu_custom_call.1} parent=1 // loop_footer_branch
      %24 = sbr.rel target = $region3
    $region8: #{tpu_custom_call.1} parent=1 // loop_exit
      _
    %802 = vsyncpa [#allocation5], 1
    %s803 = scalar_lea.sflag [#allocation5], 1
    %804 = vsyncpa %s803, 1
    %805 = vsyncpa [#allocation7], 1
    %s806 = scalar_lea.sflag [#allocation7], 1
    %807 = vsyncpa %s806, 1

</llo_original>
